<compile_context>
chip_gen: v5e
topology: v5e:2x2
jax: 0.10.0
libtpu: 0.0.40
codegen_flags: <defaults>
</compile_context>

<pallas_src>
import jax
import jax.numpy as jnp
from jax.experimental import pallas as pl
from jax.experimental.pallas import tpu as pltpu

_LANE = 128
_TARGET_F32_BLOCK_BYTES = 4 * 1024 * 1024   # ~4 MiB f32-equivalent per block
_MIN_SPLIT_BLOCK_BYTES = 1 * 1024 * 1024    # don't force extra steps below this


def _temporal_sub_mean_kernel(x_ref, o_ref):
    # Block shape: (G, T, HW_TILE).  Temporal mean over axis=1 in f32, then
    # subtract (VPU/XLU have huge slack; HBM is the binding resource).
    xf = x_ref[...].astype(jnp.float32)
    mean = jnp.mean(xf, axis=1, keepdims=True)        # (G, 1, HW_TILE)
    o_ref[...] = (xf - mean).astype(o_ref.dtype)


def _vmem_limit_bytes():
    """3/4 of physical VMEM, capped at 64 MiB (≈48 MiB on v7x, 64 MiB on v5e/v6e)."""
    cap = 128 * 1024 * 1024
    try:
        cap = int(getattr(pltpu.get_tpu_info(), "vmem_capacity_bytes", cap))
    except Exception:
        pass
    return min((cap * 3) // 4, 64 * 1024 * 1024)


@jax.jit
def temporal_sub_mean(x):
    """x: (b, c, t, h, w) -> x - mean_t(x), matching TemporalSubMeanBlock."""
    b, c, t, h, w = x.shape
    bc, hw = b * c, h * w
    itemsize = jnp.dtype(x.dtype).itemsize

    vmem_limit = _vmem_limit_bytes()
    # Per-element VMEM cost of one block: double-buffered input + output tiles
    # (4 * itemsize) plus the in-kernel f32 intermediates (xf, xf - mean).
    per_elem_vmem = 4 * itemsize + 8
    max_block_elems = max(t, (vmem_limit // 2) // per_elem_vmem)
    target_block_elems = min(_TARGET_F32_BLOCK_BYTES // 4, max_block_elems)

    # ---- lane (h*w) tiling: whole axis if it fits (legal even when not a
    # multiple of 128 since block dim == full array dim), otherwise
    # multiple-of-128 tiles with a ragged, masked last block.  Never jnp.pad.
    max_hw_tile = max(_LANE, target_block_elems // t)
    if hw <= max_hw_tile:
        hw_tile, num_hw_blocks = hw, 1
    else:
        hw_tile = max(_LANE, (max_hw_tile // _LANE) * _LANE)
        num_hw_blocks = pl.cdiv(hw, hw_tile)
    # NOTE: T is never tiled (the mean needs the full temporal extent per
    # block); pathologically long clips with huge h*w would need a 2-pass kernel.

    # ---- (b*c) grouping: pack slices until the block reaches the target size.
    slice_elems = t * hw_tile
    g = max(1, min(bc, target_block_elems // slice_elems))

    # Keep >= 4 total grid steps when there is enough data (>= 2 per TensorCore
    # on dual-TC chips, and real double-buffer overlap everywhere else).
    total_bytes = bc * t * hw * itemsize
    if (total_bytes >= 4 * _MIN_SPLIT_BLOCK_BYTES
            and num_hw_blocks * pl.cdiv(bc, g) < 4):
        g = max(1, min(g, pl.cdiv(bc, pl.cdiv(4, num_hw_blocks))))
    num_bc_blocks = pl.cdiv(bc, g)

    x2 = x.reshape(bc, t, hw)                 # contiguous reshape: no HBM copy
    n_elem = bc * t * hw

    out = pl.pallas_call(
        _temporal_sub_mean_kernel,
        out_shape=jax.ShapeDtypeStruct((bc, t, hw), x.dtype),
        grid_spec=pltpu.PrefetchScalarGridSpec(
            num_scalar_prefetch=0,
            grid=(num_bc_blocks, num_hw_blocks),
            in_specs=[pl.BlockSpec((g, t, hw_tile), lambda i, j: (i, 0, j))],
            out_specs=pl.BlockSpec((g, t, hw_tile), lambda i, j: (i, 0, j)),
        ),
        compiler_params=pltpu.CompilerParams(
            dimension_semantics=("parallel", "parallel"),
            vmem_limit_bytes=vmem_limit,
        ),
        cost_estimate=pl.CostEstimate(
            flops=2 * n_elem,
            transcendentals=0,
            bytes_accessed=2 * n_elem * itemsize,
        ),
    )(x2)

    return out.reshape(b, c, t, h, w)


def _ref(x):
    return x - jnp.mean(x.astype(jnp.float32), axis=2, keepdims=True).astype(x.dtype)


if __name__ == "__main__":
    key = jax.random.PRNGKey(0)

    # Primary shape consistent with the module's 5-D video input.
    b, c, t, h, w = 2, 4, 8, 16, 16
    x = jax.random.normal(key, (b, c, t, h, w), dtype=jnp.float32)
    out = jax.block_until_ready(temporal_sub_mean(x))
    assert out.shape == x.shape
    assert jnp.allclose(out, x - jnp.mean(x, axis=2, keepdims=True),
                        atol=1e-5, rtol=1e-5)

    # Odd spatial size (h*w = 49, not a multiple of 128): exercises the
    # full-lane-dim block path with masked partial stores.
    x_small = jax.random.normal(jax.random.PRNGKey(1), (2, 3, 8, 7, 7),
                                dtype=jnp.float32)
    out_small = jax.block_until_ready(temporal_sub_mean(x_small))
    assert jnp.allclose(out_small, x_small - jnp.mean(x_small, axis=2, keepdims=True),
                        atol=1e-5, rtol=1e-5)

    # Larger shape (>= 4 MiB, bc not divisible by the group size): exercises
    # the multi-step grid and the ragged (masked) last bc block.
    x_big = jax.random.normal(jax.random.PRNGKey(2), (2, 9, 8, 96, 96),
                              dtype=jnp.float32)
    out_big = jax.block_until_ready(temporal_sub_mean(x_big))
    assert jnp.allclose(out_big, x_big - jnp.mean(x_big, axis=2, keepdims=True),
                        atol=1e-5, rtol=1e-5)

    print("KERNEL_OK")
</pallas_src>

<mosaic_0001>
module attributes {stable_mosaic.version = 11 : i64} {
  func.func @_temporal_sub_mean_kernel(%arg0: i32, %arg1: i32, %arg2: memref<8x8x256xf32, #tpu.memory_space<vmem>>, %arg3: memref<8x8x256xf32, #tpu.memory_space<vmem>>) attributes {dimension_semantics = [#tpu.dimension_semantics<parallel>, #tpu.dimension_semantics<parallel>], iteration_bounds = array<i64: 1, 1>, scalar_prefetch = 0 : i64, scratch_operands = 0 : i64, tpu.core_type = #tpu.core_type<tc>, window_params = [{transform_indices = @transform_0, window_bounds = array<i64: 8, 8, 256>}, {transform_indices = @transform_1, window_bounds = array<i64: 8, 8, 256>}]} {
    %c0 = arith.constant 0 : index
    %c0_0 = arith.constant 0 : index
    %c0_1 = arith.constant 0 : index
    %0 = vector.load %arg2[%c0, %c0_0, %c0_1] : memref<8x8x256xf32, #tpu.memory_space<vmem>>, vector<8x8x256xf32>
    %cst = arith.constant dense<0.000000e+00> : vector<8x256xf32>
    %1 = vector.multi_reduction <add>, %0, %cst [1] : vector<8x8x256xf32> to vector<8x256xf32>
    %2 = vector.shape_cast %1 : vector<8x256xf32> to vector<8x1x256xf32>
    %cst_2 = arith.constant 8.000000e+00 : f32
    %3 = vector.broadcast %cst_2 : f32 to vector<8x1x256xf32>
    %4 = arith.divf %2, %3 : vector<8x1x256xf32>
    %5 = vector.broadcast %4 : vector<8x1x256xf32> to vector<8x8x256xf32>
    %6 = arith.subf %0, %5 : vector<8x8x256xf32>
    %c0_3 = arith.constant 0 : index
    %c0_4 = arith.constant 0 : index
    %c0_5 = arith.constant 0 : index
    %7 = vector.load %arg3[%c0_3, %c0_4, %c0_5] : memref<8x8x256xf32, #tpu.memory_space<vmem>>, vector<8x8x256xf32>
    tpu.vector_store %arg3[%c0_3, %c0_4, %c0_5], %6 {strides = array<i32>} : memref<8x8x256xf32, #tpu.memory_space<vmem>>, vector<8x8x256xf32>,
    return
  }
  func.func @transform_0(%arg0: i32, %arg1: i32) -> (i32, i32, i32) {
    %c0_i32 = arith.constant 0 : i32
    %c0_i32_0 = arith.constant 0 : i32
    return %arg0, %c0_i32, %arg1 : i32, i32, i32
  }
  func.func @transform_1(%arg0: i32, %arg1: i32) -> (i32, i32, i32) {
    %c0_i32 = arith.constant 0 : i32
    %c0_i32_0 = arith.constant 0 : i32
    return %arg0, %c0_i32, %arg1 : i32, i32, i32
  }
}

</mosaic_0001>

<llo_original>
// kernel: temporal_sub_mean.1
$region0: #{temporal_sub_mean.1}
  #allocation0 [shape = 'u32[]', space=smem, size = 0x4, offset = 0x4, fixed_abs, tag = 'smem constant byte address 0x4 - core index']
  #allocation1 [shape = 'u32[72,128]{1,0:T(1,128)}', space=vmem, size = 0x9000, scoped, tag = 'internal scratch']
  %s0 = inlined_call_operand.vmem [shape: f32[8,8,256], index: 0, kind: input, shape index: {}]
  %s1 = inlined_call_operand.vmem [shape: f32[8,8,256], index: 1, kind: output, shape index: {}]
  %s2 = sld [smem:[#allocation0]]
  $region14: #{temporal_sub_mean.1} parent=0
    _
  %s4 = ssub.s32 1, %s2
  %s5 = scalar_select 0, %s4, %s2
  // Predicated region
  $region2: #{temporal_sub_mean.1} parent=0 // pred_check
    _
  $region3: #{temporal_sub_mean.1} parent=0 // pred_check_branch
    %7 = sbr.rel (0) target = $region5
  $region4: #{temporal_sub_mean.1} parent=0 // pred_region
    _
  $region5: #{temporal_sub_mean.1} parent=0 // pred_fallthru
    _
  %v8 = vld [vmem:[%s0] sm:$0xff]
  %v9 = vld [vmem:[%s0 + $0x8] sm:$0xff]
  %v10 = vld [vmem:[%s0 + $0x10] sm:$0xff]
  %v11 = vld [vmem:[%s0 + $0x18] sm:$0xff]
  %v12 = vld [vmem:[%s0 + $0x20] sm:$0xff]
  %v13 = vld [vmem:[%s0 + $0x28] sm:$0xff]
  %v14 = vld [vmem:[%s0 + $0x30] sm:$0xff]
  %v15 = vld [vmem:[%s0 + $0x38] sm:$0xff]
  %v16 = vld [vmem:[%s0 + $0x40] sm:$0xff]
  %v17 = vld [vmem:[%s0 + $0x48] sm:$0xff]
  %v18 = vld [vmem:[%s0 + $0x50] sm:$0xff]
  %v19 = vld [vmem:[%s0 + $0x58] sm:$0xff]
  %v20 = vld [vmem:[%s0 + $0x60] sm:$0xff]
  %v21 = vld [vmem:[%s0 + $0x68] sm:$0xff]
  %v22 = vld [vmem:[%s0 + $0x70] sm:$0xff]
  %v23 = vld [vmem:[%s0 + $0x78] sm:$0xff]
  %v24 = vrot.slane %v8, 4
  %v25 = vadd.f32 %v8, %v24
  %v26 = vrot.slane %v25, 2
  %v27 = vadd.f32 %v25, %v26
  %v28 = vrot.slane %v27, 1
  %v29 = vadd.f32 %v27, %v28
  %v30 = vrot.slane %v9, 4
  %v31 = vadd.f32 %v9, %v30
  %v32 = vrot.slane %v31, 2
  %v33 = vadd.f32 %v31, %v32
  %v34 = vrot.slane %v33, 1
  %v35 = vadd.f32 %v33, %v34
  %v36 = vrot.slane %v10, 4
  %v37 = vadd.f32 %v10, %v36
  %v38 = vrot.slane %v37, 2
  %v39 = vadd.f32 %v37, %v38
  %v40 = vrot.slane %v39, 1
  %v41 = vadd.f32 %v39, %v40
  %v42 = vrot.slane %v11, 4
  %v43 = vadd.f32 %v11, %v42
  %v44 = vrot.slane %v43, 2
  %v45 = vadd.f32 %v43, %v44
  %v46 = vrot.slane %v45, 1
  %v47 = vadd.f32 %v45, %v46
  %v48 = vrot.slane %v12, 4
  %v49 = vadd.f32 %v12, %v48
  %v50 = vrot.slane %v49, 2
  %v51 = vadd.f32 %v49, %v50
  %v52 = vrot.slane %v51, 1
  %v53 = vadd.f32 %v51, %v52
  %v54 = vrot.slane %v13, 4
  %v55 = vadd.f32 %v13, %v54
  %v56 = vrot.slane %v55, 2
  %v57 = vadd.f32 %v55, %v56
  %v58 = vrot.slane %v57, 1
  %v59 = vadd.f32 %v57, %v58
  %v60 = vrot.slane %v14, 4
  %v61 = vadd.f32 %v14, %v60
  %v62 = vrot.slane %v61, 2
  %v63 = vadd.f32 %v61, %v62
  %v64 = vrot.slane %v63, 1
  %v65 = vadd.f32 %v63, %v64
  %v66 = vrot.slane %v15, 4
  %v67 = vadd.f32 %v15, %v66
  %v68 = vrot.slane %v67, 2
  %v69 = vadd.f32 %v67, %v68
  %v70 = vrot.slane %v69, 1
  %v71 = vadd.f32 %v69, %v70
  %v72 = vrot.slane %v16, 4
  %v73 = vadd.f32 %v16, %v72
  %v74 = vrot.slane %v73, 2
  %v75 = vadd.f32 %v73, %v74
  %v76 = vrot.slane %v75, 1
  %v77 = vadd.f32 %v75, %v76
  %v78 = vrot.slane %v17, 4
  %v79 = vadd.f32 %v17, %v78
  %v80 = vrot.slane %v79, 2
  %v81 = vadd.f32 %v79, %v80
  %v82 = vrot.slane %v81, 1
  %v83 = vadd.f32 %v81, %v82
  %v84 = vrot.slane %v18, 4
  %v85 = vadd.f32 %v18, %v84
  %v86 = vrot.slane %v85, 2
  %v87 = vadd.f32 %v85, %v86
  %v88 = vrot.slane %v87, 1
  %v89 = vadd.f32 %v87, %v88
  %v90 = vrot.slane %v19, 4
  %v91 = vadd.f32 %v19, %v90
  %v92 = vrot.slane %v91, 2
  %v93 = vadd.f32 %v91, %v92
  %v94 = vrot.slane %v93, 1
  %v95 = vadd.f32 %v93, %v94
  %v96 = vrot.slane %v20, 4
  %v97 = vadd.f32 %v20, %v96
  %v98 = vrot.slane %v97, 2
  %v99 = vadd.f32 %v97, %v98
  %v100 = vrot.slane %v99, 1
  %v101 = vadd.f32 %v99, %v100
  %v102 = vrot.slane %v21, 4
  %v103 = vadd.f32 %v21, %v102
  %v104 = vrot.slane %v103, 2
  %v105 = vadd.f32 %v103, %v104
  %v106 = vrot.slane %v105, 1
  %v107 = vadd.f32 %v105, %v106
  %v108 = vrot.slane %v22, 4
  %v109 = vadd.f32 %v22, %v108
  %v110 = vrot.slane %v109, 2
  %v111 = vadd.f32 %v109, %v110
  %v112 = vrot.slane %v111, 1
  %v113 = vadd.f32 %v111, %v112
  %v114 = vrot.slane %v23, 4
  %v115 = vadd.f32 %v23, %v114
  %v116 = vrot.slane %v115, 2
  %v117 = vadd.f32 %v115, %v116
  %v118 = vrot.slane %v117, 1
  %v119 = vadd.f32 %v117, %v118
  %v120 = vrcp.pop 8.0
  %v121 = vmul.f32 8.0, %v120
  %v122 = vsub.f32 1.0, %v121
  %v123 = vmul.f32 %v120, %v122
  %v124 = vadd.f32 %v120, %v123
  %vm125 = vweird.f32 %v120
  %v126 = vsel %vm125, %v120, %v124
  %v127 = vmul.f32 %v29, %v126
  %v128 = vmul.f32 %v35, %v126
  %v129 = vmul.f32 %v41, %v126
  %v130 = vmul.f32 %v47, %v126
  %v131 = vmul.f32 %v53, %v126
  %v132 = vmul.f32 %v59, %v126
  %v133 = vmul.f32 %v65, %v126
  %v134 = vmul.f32 %v71, %v126
  %v135 = vmul.f32 %v77, %v126
  %v136 = vmul.f32 %v83, %v126
  %v137 = vmul.f32 %v89, %v126
  %v138 = vmul.f32 %v95, %v126
  %v139 = vmul.f32 %v101, %v126
  %v140 = vmul.f32 %v107, %v126
  %v141 = vmul.f32 %v113, %v126
  %v142 = vmul.f32 %v119, %v126
  %v143 = vsub.f32 %v8, %v127
  %v144 = vsub.f32 %v9, %v128
  %v145 = vsub.f32 %v10, %v129
  %v146 = vsub.f32 %v11, %v130
  %v147 = vsub.f32 %v12, %v131
  %v148 = vsub.f32 %v13, %v132
  %v149 = vsub.f32 %v14, %v133
  %v150 = vsub.f32 %v15, %v134
  %v151 = vsub.f32 %v16, %v135
  %v152 = vsub.f32 %v17, %v136
  %v153 = vsub.f32 %v18, %v137
  %v154 = vsub.f32 %v19, %v138
  %v155 = vsub.f32 %v20, %v139
  %v156 = vsub.f32 %v21, %v140
  %v157 = vsub.f32 %v22, %v141
  %v158 = vsub.f32 %v23, %v142
  %159 = vst [vmem:[%s1] sm:$0xff] %v143
  %160 = vst [vmem:[%s1 + $0x8] sm:$0xff] %v144
  %161 = vst [vmem:[%s1 + $0x10] sm:$0xff] %v145
  %162 = vst [vmem:[%s1 + $0x18] sm:$0xff] %v146
  %163 = vst [vmem:[%s1 + $0x20] sm:$0xff] %v147
  %164 = vst [vmem:[%s1 + $0x28] sm:$0xff] %v148
  %165 = vst [vmem:[%s1 + $0x30] sm:$0xff] %v149
  %166 = vst [vmem:[%s1 + $0x38] sm:$0xff] %v150
  %167 = vst [vmem:[%s1 + $0x40] sm:$0xff] %v151
  %168 = vst [vmem:[%s1 + $0x48] sm:$0xff] %v152
  %169 = vst [vmem:[%s1 + $0x50] sm:$0xff] %v153
  %170 = vst [vmem:[%s1 + $0x58] sm:$0xff] %v154
  %171 = vst [vmem:[%s1 + $0x60] sm:$0xff] %v155
  %172 = vst [vmem:[%s1 + $0x68] sm:$0xff] %v156
  %173 = vst [vmem:[%s1 + $0x70] sm:$0xff] %v157
  %174 = vst [vmem:[%s1 + $0x78] sm:$0xff] %v158
  // Predicated region
  $region6: #{temporal_sub_mean.1} parent=0 // pred_check
    _
  $region7: #{temporal_sub_mean.1} parent=0 // pred_check_branch
    %176 = sbr.rel (0) target = $region9
  $region8: #{temporal_sub_mean.1} parent=0 // pred_region
    _
  $region9: #{temporal_sub_mean.1} parent=0 // pred_fallthru
    _
  // Predicated region
  $region10: #{temporal_sub_mean.1} parent=0 // pred_check
    _
  $region11: #{temporal_sub_mean.1} parent=0 // pred_check_branch
    %178 = sbr.rel (0) target = $region13
  $region12: #{temporal_sub_mean.1} parent=0 // pred_region
    _
  $region13: #{temporal_sub_mean.1} parent=0 // pred_fallthru
    _

</llo_original>
